<compile_context>
chip_gen: v7x
topology: tpu7x:2x2x1
jax: 0.10.0
libtpu: 0.0.40
codegen_flags: <defaults>
</compile_context>

<pallas_src>
import functools

import jax
import jax.numpy as jnp
from jax.experimental import pallas as pl
from jax.experimental.pallas import tpu as pltpu

MODEL_DIM = 128
FFN_DIM = 256
LN_EPS = 1e-5


def ffn_kernel(x_ref, w1_ref, b1_ref, w2_ref, aux_ref, o_ref):
    """One token tile: x(tm,D), W1(D,F), b1(1,F), W2(F,D), aux(3,D)=[b2;gamma;beta]."""
    # Load the x tile once; keep an f32 copy for the residual / LayerNorm path
    # and a weight-dtype copy for the MXU.
    x_raw = x_ref[...]
    x_f32 = x_raw.astype(jnp.float32)
    x_mm = x_raw.astype(w1_ref.dtype)

    # FFN: (tm,D)@(D,F) -> relu -> (tm,F)@(F,D), all with f32 accumulation.
    h = jnp.dot(x_mm, w1_ref[...], preferred_element_type=jnp.float32)
    h = jnp.maximum(h + b1_ref[...], 0.0)
    y = jnp.dot(h.astype(w2_ref.dtype), w2_ref[...],
                preferred_element_type=jnp.float32)

    # dropout(p=0.0) is identity; residual add (+ conv2 bias) in f32.
    aux = aux_ref[...]
    r = x_f32 + y + aux[0:1, :]

    # LayerNorm over last axis (biased variance, eps inside rsqrt, affine), f32.
    mean = jnp.mean(r, axis=-1, keepdims=True)
    centered = r - mean
    var = jnp.mean(centered * centered, axis=-1, keepdims=True)
    norm = centered * jax.lax.rsqrt(var + LN_EPS)
    o_ref[...] = (norm * aux[1:2, :] + aux[2:3, :]).astype(o_ref.dtype)


def _round_up(n, m):
    return (n + m - 1) // m * m


@functools.partial(jax.jit, static_argnames=("tm", "use_bf16_matmul"))
def positional_wise_ffn(x, w1, b1, w2, b2, gamma, beta, *, tm=512,
                        use_bf16_matmul=True):
    """x: (B, S, model_dim) -> (B, S, model_dim)."""
    B, S, D = x.shape
    F = w1.shape[1]
    T = B * S

    # Effective token tile: large by default, but never over-pad tiny inputs,
    # and always a multiple of 8 (sublane constraint).
    tm_eff = int(_round_up(min(tm, _round_up(T, 8)), 8))
    T_pad = _round_up(T, tm_eff)

    x2d = x.reshape(T, D)
    if T_pad != T:
        x2d = jnp.pad(x2d, ((0, T_pad - T), (0, 0)))

    mat_dtype = jnp.bfloat16 if use_bf16_matmul else w1.dtype
    w1m = w1.astype(mat_dtype)
    w2m = w2.astype(mat_dtype)
    b1f = b1.astype(jnp.float32)
    # Fold the three (1, D) vectors into one operand: rows = [b2, gamma, beta].
    aux = jnp.concatenate(
        [b2.astype(jnp.float32), gamma.astype(jnp.float32),
         beta.astype(jnp.float32)], axis=0)

    grid = (T_pad // tm_eff,)

    out2d = pl.pallas_call(
        ffn_kernel,
        out_shape=jax.ShapeDtypeStruct((T_pad, D), x.dtype),
        grid_spec=pltpu.PrefetchScalarGridSpec(
            num_scalar_prefetch=0,
            grid=grid,
            in_specs=[
                pl.BlockSpec((tm_eff, D), lambda i: (i, 0)),  # x tile
                pl.BlockSpec((D, F), lambda i: (0, 0)),       # W1 (grid-invariant)
                pl.BlockSpec((1, F), lambda i: (0, 0)),       # b1
                pl.BlockSpec((F, D), lambda i: (0, 0)),       # W2
                pl.BlockSpec((3, D), lambda i: (0, 0)),       # [b2; gamma; beta]
            ],
            out_specs=pl.BlockSpec((tm_eff, D), lambda i: (i, 0)),
        ),
        compiler_params=pltpu.CompilerParams(
            dimension_semantics=("parallel",),   # megacore splits the token loop
            vmem_limit_bytes=32 * 1024 * 1024,   # headroom for tm up to ~2048
        ),
    )(x2d, w1m, b1f, w2m, aux)

    if T_pad != T:
        out2d = out2d[:T]
    return out2d.reshape(B, S, D)


def init_params(key, model_dim=MODEL_DIM, ffn_dim=FFN_DIM, dtype=jnp.float32):
    """Deterministic synthetic parameter init (shapes match the PyTorch module).

    PyTorch Conv1d weight is (out_ch, in_ch, 1); we store the k=1 conv as an
    (in_ch, out_ch) matmul weight (W.T squeezed), which is identical math.
    """
    k1, k2, k3, k4 = jax.random.split(key, 4)
    s1 = 1.0 / jnp.sqrt(model_dim)
    s2 = 1.0 / jnp.sqrt(ffn_dim)
    w1 = jax.random.uniform(k1, (model_dim, ffn_dim), dtype, -s1, s1)   # w1.weight^T
    b1 = jax.random.uniform(k2, (1, ffn_dim), dtype, -s1, s1)           # w1.bias
    w2 = jax.random.uniform(k3, (ffn_dim, model_dim), dtype, -s2, s2)   # w2.weight^T
    b2 = jax.random.uniform(k4, (1, model_dim), dtype, -s2, s2)         # w2.bias
    gamma = jnp.ones((1, model_dim), dtype)                             # layer_norm.weight
    beta = jnp.zeros((1, model_dim), dtype)                             # layer_norm.bias
    return w1, b1, w2, b2, gamma, beta


if __name__ == "__main__":
    key = jax.random.PRNGKey(0)
    kx, kp = jax.random.split(key)

    B, S = 2, 8
    x = jax.random.normal(kx, (B, S, MODEL_DIM), jnp.float32)
    params = init_params(kp)
    w1, b1, w2, b2, gamma, beta = params

    def reference(xin, mat_dtype):
        # Pure-JAX reference mirroring the kernel's matmul compute dtype.
        x2 = xin.reshape(-1, MODEL_DIM)
        w1m = w1.astype(mat_dtype)
        w2m = w2.astype(mat_dtype)
        h = jnp.dot(x2.astype(mat_dtype), w1m, preferred_element_type=jnp.float32) + b1
        h = jnp.maximum(h, 0.0)
        y = jnp.dot(h.astype(mat_dtype), w2m, preferred_element_type=jnp.float32) + b2
        r = x2 + y
        mean = r.mean(-1, keepdims=True)
        var = ((r - mean) ** 2).mean(-1, keepdims=True)
        o = (r - mean) * jax.lax.rsqrt(var + LN_EPS) * gamma + beta
        return o.reshape(xin.shape)

    # Exact f32 path: matches the PyTorch-style f32 reference tightly.
    out_f32 = positional_wise_ffn(x, *params, use_bf16_matmul=False)
    jax.block_until_ready(out_f32)
    ref_f32 = reference(x, jnp.float32)
    assert out_f32.shape == (B, S, MODEL_DIM)
    assert jnp.allclose(out_f32, ref_f32, atol=1e-4, rtol=1e-4)

    # Fast path (default): bf16 matmul inputs, f32 accumulation + f32 LayerNorm.
    out_bf16 = positional_wise_ffn(x, *params)
    jax.block_until_ready(out_bf16)
    ref_bf16 = reference(x, jnp.bfloat16)
    assert jnp.allclose(out_bf16, ref_bf16, atol=3e-3, rtol=3e-3)
    assert jnp.allclose(out_bf16, ref_f32, atol=2e-2, rtol=2e-2)

    print("KERNEL_OK")
</pallas_src>

<mosaic_0001>
module attributes {stable_mosaic.version = 11 : i64} {
  func.func @ffn_kernel(%arg0: i32, %arg1: memref<16x128xf32, #tpu.memory_space<vmem>>, %arg2: memref<128x256xf32, #tpu.memory_space<vmem>>, %arg3: memref<1x256xf32, #tpu.memory_space<vmem>>, %arg4: memref<256x128xf32, #tpu.memory_space<vmem>>, %arg5: memref<3x128xf32, #tpu.memory_space<vmem>>, %arg6: memref<16x128xf32, #tpu.memory_space<vmem>>) attributes {dimension_semantics = [#tpu.dimension_semantics<parallel>], iteration_bounds = array<i64: 1>, scalar_prefetch = 0 : i64, scratch_operands = 0 : i64, tpu.core_type = #tpu.core_type<tc>, window_params = [{transform_indices = @transform_0, window_bounds = array<i64: 16, 128>}, {pipeline_mode = #tpu.pipeline_mode<synchronous>, transform_indices = @transform_1, window_bounds = array<i64: 128, 256>}, {pipeline_mode = #tpu.pipeline_mode<synchronous>, transform_indices = @transform_2, window_bounds = array<i64: 1, 256>}, {pipeline_mode = #tpu.pipeline_mode<synchronous>, transform_indices = @transform_3, window_bounds = array<i64: 256, 128>}, {pipeline_mode = #tpu.pipeline_mode<synchronous>, transform_indices = @transform_4, window_bounds = array<i64: 3, 128>}, {transform_indices = @transform_5, window_bounds = array<i64: 16, 128>}]} {
    %c0 = arith.constant 0 : index
    %c0_0 = arith.constant 0 : index
    %0 = vector.load %arg1[%c0, %c0_0] : memref<16x128xf32, #tpu.memory_space<vmem>>, vector<16x128xf32>
    %c0_1 = arith.constant 0 : index
    %c0_2 = arith.constant 0 : index
    %1 = vector.load %arg2[%c0_1, %c0_2] : memref<128x256xf32, #tpu.memory_space<vmem>>, vector<128x256xf32>
    %cst = arith.constant dense<0.000000e+00> : vector<16x256xf32>
    %2 = tpu.matmul %0, %1, %cst {dimension_numbers = #tpu.dot_dimension_numbers<[1], [0], [0], [1], [0, 0, 1, 1], [], []>} : vector<16x128xf32>, vector<128x256xf32>, vector<16x256xf32> -> vector<16x256xf32>
    %c0_3 = arith.constant 0 : index
    %c0_4 = arith.constant 0 : index
    %3 = vector.load %arg3[%c0_3, %c0_4] : memref<1x256xf32, #tpu.memory_space<vmem>>, vector<1x256xf32>
    %4 = vector.broadcast %3 : vector<1x256xf32> to vector<16x256xf32>
    %5 = arith.addf %2, %4 : vector<16x256xf32>
    %cst_5 = arith.constant 0.000000e+00 : f32
    %6 = vector.broadcast %cst_5 : f32 to vector<16x256xf32>
    %7 = arith.maximumf %5, %6 : vector<16x256xf32>
    %c0_6 = arith.constant 0 : index
    %c0_7 = arith.constant 0 : index
    %8 = vector.load %arg4[%c0_6, %c0_7] : memref<256x128xf32, #tpu.memory_space<vmem>>, vector<256x128xf32>
    %cst_8 = arith.constant dense<0.000000e+00> : vector<16x128xf32>
    %9 = tpu.matmul %7, %8, %cst_8 {dimension_numbers = #tpu.dot_dimension_numbers<[1], [0], [0], [1], [0, 0, 1, 1], [], []>} : vector<16x256xf32>, vector<256x128xf32>, vector<16x128xf32> -> vector<16x128xf32>
    %c0_9 = arith.constant 0 : index
    %c0_10 = arith.constant 0 : index
    %10 = vector.load %arg5[%c0_9, %c0_10] : memref<3x128xf32, #tpu.memory_space<vmem>>, vector<3x128xf32>
    %11 = arith.addf %0, %9 : vector<16x128xf32>
    %12 = vector.extract_strided_slice %10 {offsets = [0, 0], sizes = [1, 128], strides = [1, 1]} : vector<3x128xf32> to vector<1x128xf32>
    %13 = vector.broadcast %12 : vector<1x128xf32> to vector<16x128xf32>
    %14 = arith.addf %11, %13 : vector<16x128xf32>
    %cst_11 = arith.constant dense<0.000000e+00> : vector<16xf32>
    %15 = vector.multi_reduction <add>, %14, %cst_11 [1] : vector<16x128xf32> to vector<16xf32>
    %16 = vector.shape_cast %15 : vector<16xf32> to vector<16x1xf32>
    %cst_12 = arith.constant 1.280000e+02 : f32
    %17 = vector.broadcast %cst_12 : f32 to vector<16x1xf32>
    %18 = arith.divf %16, %17 : vector<16x1xf32>
    %19 = vector.broadcast %18 : vector<16x1xf32> to vector<16x128xf32>
    %20 = arith.subf %14, %19 : vector<16x128xf32>
    %21 = arith.mulf %20, %20 : vector<16x128xf32>
    %cst_13 = arith.constant dense<0.000000e+00> : vector<16xf32>
    %22 = vector.multi_reduction <add>, %21, %cst_13 [1] : vector<16x128xf32> to vector<16xf32>
    %23 = vector.shape_cast %22 : vector<16xf32> to vector<16x1xf32>
    %cst_14 = arith.constant 1.280000e+02 : f32
    %24 = vector.broadcast %cst_14 : f32 to vector<16x1xf32>
    %25 = arith.divf %23, %24 : vector<16x1xf32>
    %cst_15 = arith.constant 9.99999974E-6 : f32
    %26 = vector.broadcast %cst_15 : f32 to vector<16x1xf32>
    %27 = arith.addf %25, %26 : vector<16x1xf32>
    %28 = math.rsqrt %27 : vector<16x1xf32>
    %29 = vector.broadcast %28 : vector<16x1xf32> to vector<16x128xf32>
    %30 = arith.mulf %20, %29 : vector<16x128xf32>
    %31 = vector.extract_strided_slice %10 {offsets = [1, 0], sizes = [1, 128], strides = [1, 1]} : vector<3x128xf32> to vector<1x128xf32>
    %32 = vector.broadcast %31 : vector<1x128xf32> to vector<16x128xf32>
    %33 = arith.mulf %30, %32 : vector<16x128xf32>
    %34 = vector.extract_strided_slice %10 {offsets = [2, 0], sizes = [1, 128], strides = [1, 1]} : vector<3x128xf32> to vector<1x128xf32>
    %35 = vector.broadcast %34 : vector<1x128xf32> to vector<16x128xf32>
    %36 = arith.addf %33, %35 : vector<16x128xf32>
    %c0_16 = arith.constant 0 : index
    %c0_17 = arith.constant 0 : index
    %37 = vector.load %arg6[%c0_16, %c0_17] : memref<16x128xf32, #tpu.memory_space<vmem>>, vector<16x128xf32>
    tpu.vector_store %arg6[%c0_16, %c0_17], %36 {strides = array<i32>} : memref<16x128xf32, #tpu.memory_space<vmem>>, vector<16x128xf32>,
    return
  }
  func.func @transform_0(%arg0: i32) -> (i32, i32) {
    %c0_i32 = arith.constant 0 : i32
    %c0_i32_0 = arith.constant 0 : i32
    return %arg0, %c0_i32 : i32, i32
  }
  func.func @transform_1(%arg0: i32) -> (i32, i32) {
    %c0_i32 = arith.constant 0 : i32
    %c0_i32_0 = arith.constant 0 : i32
    %c0_i32_1 = arith.constant 0 : i32
    return %c0_i32, %c0_i32_0 : i32, i32
  }
  func.func @transform_2(%arg0: i32) -> (i32, i32) {
    %c0_i32 = arith.constant 0 : i32
    %c0_i32_0 = arith.constant 0 : i32
    %c0_i32_1 = arith.constant 0 : i32
    return %c0_i32, %c0_i32_0 : i32, i32
  }
  func.func @transform_3(%arg0: i32) -> (i32, i32) {
    %c0_i32 = arith.constant 0 : i32
    %c0_i32_0 = arith.constant 0 : i32
    %c0_i32_1 = arith.constant 0 : i32
    return %c0_i32, %c0_i32_0 : i32, i32
  }
  func.func @transform_4(%arg0: i32) -> (i32, i32) {
    %c0_i32 = arith.constant 0 : i32
    %c0_i32_0 = arith.constant 0 : i32
    %c0_i32_1 = arith.constant 0 : i32
    return %c0_i32, %c0_i32_0 : i32, i32
  }
  func.func @transform_5(%arg0: i32) -> (i32, i32) {
    %c0_i32 = arith.constant 0 : i32
    %c0_i32_0 = arith.constant 0 : i32
    return %arg0, %c0_i32 : i32, i32
  }
}

</mosaic_0001>

<llo_original>
// kernel: positional_wise_ffn.1
$region0: #{positional_wise_ffn.1}
  #allocation0 [shape = 'u32[]', space=smem, size = 0x4, offset = 0x4, fixed_abs, tag = 'smem constant byte address 0x4 - core index']
  #allocation1 [shape = 'u32[144,128]{1,0:T(1,128)}', space=vmem, size = 0x12000, scoped, tag = 'internal scratch']
  %s0 = inlined_call_operand.hbm [shape: f32[16,128], index: 0, kind: input, shape index: {}]
  %s1 = inlined_call_operand.hbm [shape: f32[128,256], index: 1, kind: input, shape index: {}]
  %s2 = inlined_call_operand.vmem [shape: f32[1,256], index: 2, kind: input, shape index: {}]
  %s3 = inlined_call_operand.hbm [shape: f32[256,128], index: 3, kind: input, shape index: {}]
  %s4 = inlined_call_operand.vmem [shape: f32[3,128], index: 4, kind: input, shape index: {}]
  %s5 = inlined_call_operand.hbm [shape: f32[16,128], index: 5, kind: output, shape index: {}]
  %s6 = sld [smem:[#allocation0]]
  $region42: #{positional_wise_ffn.1} parent=0
    _
  %s8 = ssub.s32 1, %s6
  %s9 = scalar_select 0, %s8, %s6
  $region1: #{positional_wise_ffn.1} parent=0
    #allocation2 [shape = 'u8[8192]{0}', space=vmem, size = 0x2000, scoped, tag = 'input window, operand 0, single buffered']
    #allocation3 [shape = 's32[1]{0}', space=sflag, size = 0x4, scoped, tag = 'scoped memory for positional_wise_ffn.1']
    #allocation4 [shape = 's32[1]{0}', space=sflag, size = 0x4, scoped, tag = 'scoped memory for positional_wise_ffn.1']
    #allocation5 [shape = 'u8[131072]{0}', space=vmem, size = 0x20000, scoped, tag = 'input window, operand 1, single buffered']
    #allocation6 [shape = 's32[1]{0}', space=sflag, size = 0x4, scoped, tag = 'scoped memory for positional_wise_ffn.1']
    #allocation7 [shape = 'u8[131072]{0}', space=vmem, size = 0x20000, scoped, tag = 'input window, operand 3, single buffered']
    #allocation8 [shape = 'u8[8192]{0}', space=vmem, size = 0x2000, scoped, tag = 'output window, operand 0, single buffered']
    %10 = vsyncpa [#allocation3], 0
    %11 = vsyncpa [#allocation6], 0
    %12 = vsyncpa [#allocation4], 0
    // Predicated region
    $region2: #{positional_wise_ffn.1} parent=1 // pred_check
      _
    $region3: #{positional_wise_ffn.1} parent=1 // pred_check_branch
      %14 = sbr.rel (0) target = $region5
    $region4: #{positional_wise_ffn.1} parent=1 // pred_region
      %s16 = ssub.s32 256, 256
      %17 = vsyncadd [#allocation3], %s16
      %s18 = sshll.u32 [#allocation2], 4
      %s19 = int_to_ptr.vmem [resolvable:$true] %s18
      %24 = dma.hbm_to_vmem [thread:$0]  %s0, 256, %s19, [#allocation3], 128, 128, 8
    $region5: #{positional_wise_ffn.1} parent=1 // pred_fallthru
      _
    // Predicated region
    $region6: #{positional_wise_ffn.1} parent=1 // pred_check
      _
    $region7: #{positional_wise_ffn.1} parent=1 // pred_check_branch
      %26 = sbr.rel (0) target = $region9
    $region8: #{positional_wise_ffn.1} parent=1 // pred_region
      %s28 = ssub.s32 4096, 4096
      %29 = vsyncadd [#allocation6], %s28
      %s30 = sshll.u32 [#allocation5], 4
      %s31 = int_to_ptr.vmem [resolvable:$true] %s30
      %36 = dma.hbm_to_vmem [thread:$0]  %s1, 4096, %s31, [#allocation6], 256, 256, 16
    $region9: #{positional_wise_ffn.1} parent=1 // pred_fallthru
      _
    // Predicated region
    $region10: #{positional_wise_ffn.1} parent=1 // pred_check
      _
    $region11: #{positional_wise_ffn.1} parent=1 // pred_check_branch
      %38 = sbr.rel (0) target = $region13
    $region12: #{positional_wise_ffn.1} parent=1 // pred_region
      _
    $region13: #{positional_wise_ffn.1} parent=1 // pred_fallthru
      _
    // Predicated region
    $region14: #{positional_wise_ffn.1} parent=1 // pred_check
      _
    $region15: #{positional_wise_ffn.1} parent=1 // pred_check_branch
      %40 = sbr.rel (0) target = $region17
    $region16: #{positional_wise_ffn.1} parent=1 // pred_region
      %s42 = ssub.s32 4096, 4096
      %43 = vsyncadd [#allocation6], %s42
      %s44 = sshll.u32 [#allocation7], 4
      %s45 = int_to_ptr.vmem [resolvable:$true] %s44
      %50 = dma.hbm_to_vmem [thread:$0]  %s3, 4096, %s45, [#allocation6], 128, 128, 8
    $region17: #{positional_wise_ffn.1} parent=1 // pred_fallthru
      _
    // Predicated region
    $region18: #{positional_wise_ffn.1} parent=1 // pred_check
      _
    $region19: #{positional_wise_ffn.1} parent=1 // pred_check_branch
      %52 = sbr.rel (0) target = $region21
    $region20: #{positional_wise_ffn.1} parent=1 // pred_region
      _
    $region21: #{positional_wise_ffn.1} parent=1 // pred_fallthru
      _
    // Predicated region
    $region22: #{positional_wise_ffn.1} parent=1 // pred_check
      _
    $region23: #{positional_wise_ffn.1} parent=1 // pred_check_branch
      %54 = sbr.rel (0) target = $region25
    $region24: #{positional_wise_ffn.1} parent=1 // pred_region
      %55 = dma.done [#allocation3], 256
    $region25: #{positional_wise_ffn.1} parent=1 // pred_fallthru
      _
    // Predicated region
    $region26: #{positional_wise_ffn.1} parent=1 // pred_check
      _
    $region27: #{positional_wise_ffn.1} parent=1 // pred_check_branch
      %57 = sbr.rel (0) target = $region29
    $region28: #{positional_wise_ffn.1} parent=1 // pred_region
      %58 = dma.done [#allocation6], 4096
    $region29: #{positional_wise_ffn.1} parent=1 // pred_fallthru
      _
    // Predicated region
    $region30: #{positional_wise_ffn.1} parent=1 // pred_check
      _
    $region31: #{positional_wise_ffn.1} parent=1 // pred_check_branch
      %60 = sbr.rel (0) target = $region33
    $region32: #{positional_wise_ffn.1} parent=1 // pred_region
      %61 = dma.done [#allocation6], 4096
    $region33: #{positional_wise_ffn.1} parent=1 // pred_fallthru
      _
    %v62 = vld [vmem:[#allocation2] sm:$0xff]
    %v63 = vld [vmem:[#allocation2 + $0x8] sm:$0xff]
    %v64 = vld [vmem:[#allocation5] sm:$0xff]
    %v65 = vld [vmem:[#allocation5 + $0x8] sm:$0xff]
    %v66 = vld [vmem:[#allocation5 + $0x10] sm:$0xff]
    %v67 = vld [vmem:[#allocation5 + $0x18] sm:$0xff]
    %v68 = vld [vmem:[#allocation5 + $0x20] sm:$0xff]
    %v69 = vld [vmem:[#allocation5 + $0x28] sm:$0xff]
    %v70 = vld [vmem:[#allocation5 + $0x30] sm:$0xff]
    %v71 = vld [vmem:[#allocation5 + $0x38] sm:$0xff]
    %v72 = vld [vmem:[#allocation5 + $0x40] sm:$0xff]
    %v73 = vld [vmem:[#allocation5 + $0x48] sm:$0xff]
    %v74 = vld [vmem:[#allocation5 + $0x50] sm:$0xff]
    %v75 = vld [vmem:[#allocation5 + $0x58] sm:$0xff]
    %v76 = vld [vmem:[#allocation5 + $0x60] sm:$0xff]
    %v77 = vld [vmem:[#allocation5 + $0x68] sm:$0xff]
    %v78 = vld [vmem:[#allocation5 + $0x70] sm:$0xff]
    %v79 = vld [vmem:[#allocation5 + $0x78] sm:$0xff]
    %v80 = vld [vmem:[#allocation5 + $0x80] sm:$0xff]
    %v81 = vld [vmem:[#allocation5 + $0x88] sm:$0xff]
    %v82 = vld [vmem:[#allocation5 + $0x90] sm:$0xff]
    %v83 = vld [vmem:[#allocation5 + $0x98] sm:$0xff]
    %v84 = vld [vmem:[#allocation5 + $0xa0] sm:$0xff]
    %v85 = vld [vmem:[#allocation5 + $0xa8] sm:$0xff]
    %v86 = vld [vmem:[#allocation5 + $0xb0] sm:$0xff]
    %v87 = vld [vmem:[#allocation5 + $0xb8] sm:$0xff]
    %v88 = vld [vmem:[#allocation5 + $0xc0] sm:$0xff]
    %v89 = vld [vmem:[#allocation5 + $0xc8] sm:$0xff]
    %v90 = vld [vmem:[#allocation5 + $0xd0] sm:$0xff]
    %v91 = vld [vmem:[#allocation5 + $0xd8] sm:$0xff]
    %v92 = vld [vmem:[#allocation5 + $0xe0] sm:$0xff]
    %v93 = vld [vmem:[#allocation5 + $0xe8] sm:$0xff]
    %v94 = vld [vmem:[#allocation5 + $0xf0] sm:$0xff]
    %v95 = vld [vmem:[#allocation5 + $0xf8] sm:$0xff]
    %v96 = vld [vmem:[%s2] sm:$0x3]
    %v98 = vlaneseq
    %v99 = vshrl.u32 %v98, 7
    %v100 = vsub.s32 0, %v99
    %v101 = vrot.slane %v96, %v100
    %v102 = vlaneseq
    %v103 = vshrl.u32 %v102, 7
    %v104 = vsub.s32 1, %v103
    %v105 = vrot.slane %v96, %v104
    %108 = vmatprep.subr.mxu0 %v65
    %109 = vmatpush1.msra.mxu0 %v64
    %110 = vmatprep.subr.mxu0 %v67
    %111 = vmatpush1.msra.mxu0 %v66
    %112 = vmatprep.subr.mxu0 %v69
    %113 = vmatpush1.msra.mxu0 %v68
    %114 = vmatprep.subr.mxu0 %v71
    %115 = vmatpush1.msra.mxu0 %v70
    %116 = vmatprep.subr.mxu0 %v73
    %117 = vmatpush1.msra.mxu0 %v72
    %118 = vmatprep.subr.mxu0 %v75
    %119 = vmatpush1.msra.mxu0 %v74
    %120 = vmatprep.subr.mxu0 %v77
    %121 = vmatpush1.msra.mxu0 %v76
    %122 = vmatprep.subr.mxu0 %v79
    %123 = vmatpush1.msra.mxu0 %v78
    %124 = vmatprep.subr.mxu0 %v81
    %125 = vmatpush1.msra.mxu0 %v80
    %126 = vmatprep.subr.mxu0 %v83
    %127 = vmatpush1.msra.mxu0 %v82
    %128 = vmatprep.subr.mxu0 %v85
    %129 = vmatpush1.msra.mxu0 %v84
    %130 = vmatprep.subr.mxu0 %v87
    %131 = vmatpush1.msra.mxu0 %v86
    %132 = vmatprep.subr.mxu0 %v89
    %133 = vmatpush1.msra.mxu0 %v88
    %134 = vmatprep.subr.mxu0 %v91
    %135 = vmatpush1.msra.mxu0 %v90
    %136 = vmatprep.subr.mxu0 %v93
    %137 = vmatpush1.msra.mxu0 %v92
    %138 = vmatprep.subr.mxu0 %v95
    %139 = vmatpush1.msra.mxu0 %v94
    %140 = vmatprep.subr.mxu0 0.0
    %141 = vmatpush1.msra.mxu0 0.0
    %142 = vmatprep.subr.mxu0 0.0
    %143 = vmatpush1.msra.mxu0 0.0
    %144 = vmatprep.subr.mxu0 0.0
    %145 = vmatpush1.msra.mxu0 0.0
    %146 = vmatprep.subr.mxu0 0.0
    %147 = vmatpush1.msra.mxu0 0.0
    %148 = vmatprep.subr.mxu0 0.0
    %149 = vmatpush1.msra.mxu0 0.0
    %150 = vmatprep.subr.mxu0 0.0
    %151 = vmatpush1.msra.mxu0 0.0
    %152 = vmatprep.subr.mxu0 0.0
    %153 = vmatpush1.msra.mxu0 0.0
    %154 = vmatprep.subr.mxu0 0.0
    %155 = vmatpush1.msra.mxu0 0.0
    %156 = vmatprep.subr.mxu0 0.0
    %157 = vmatpush1.msra.mxu0 0.0
    %158 = vmatprep.subr.mxu0 0.0
    %159 = vmatpush1.msra.mxu0 0.0
    %160 = vmatprep.subr.mxu0 0.0
    %161 = vmatpush1.msra.mxu0 0.0
    %162 = vmatprep.subr.mxu0 0.0
    %163 = vmatpush1.msra.mxu0 0.0
    %164 = vmatprep.subr.mxu0 0.0
    %165 = vmatpush1.msra.mxu0 0.0
    %166 = vmatprep.subr.mxu0 0.0
    %167 = vmatpush1.msra.mxu0 0.0
    %168 = vmatprep.subr.mxu0 0.0
    %169 = vmatpush1.msra.mxu0 0.0
    %170 = vmatprep.subr.mxu0 0.0
    %171 = vmatpush1.msra.mxu0 0.0
    %172 = vmatprep.mubr.f32.mxu0 0.0
    %173 = vmatmul.mubr.f32.gmra.mrb[0].mxu0 %v62
    %v174 = vpop.f32.mrb[0].mxu0
    %v175 = vadd.f32 %v101, %v174
    %v176 = vpop.f32.mrb[0].mxu0
    %v177 = vadd.f32 %v105, %v176
    %178 = vmatprep.mubr.f32.mxu0 0.0
    %179 = vmatmul.mubr.f32.gmra.mrb[0].mxu0 %v63
    %v180 = vpop.f32.mrb[0].mxu0
    %v181 = vadd.f32 %v101, %v180
    %v182 = vpop.f32.mrb[0].mxu0
    %v183 = vadd.f32 %v105, %v182
    %184 = vdwg.mxu0
    %v185 = vmax.f32 %v175, 0.0
    %v186 = vmax.f32 %v177, 0.0
    %v187 = vmax.f32 %v181, 0.0
    %v188 = vmax.f32 %v183, 0.0
    %v189 = vld [vmem:[#allocation7] sm:$0xff]
    %v190 = vld [vmem:[#allocation7 + $0x8] sm:$0xff]
    %v191 = vld [vmem:[#allocation7 + $0x10] sm:$0xff]
    %v192 = vld [vmem:[#allocation7 + $0x18] sm:$0xff]
    %v193 = vld [vmem:[#allocation7 + $0x20] sm:$0xff]
    %v194 = vld [vmem:[#allocation7 + $0x28] sm:$0xff]
    %v195 = vld [vmem:[#allocation7 + $0x30] sm:$0xff]
    %v196 = vld [vmem:[#allocation7 + $0x38] sm:$0xff]
    %v197 = vld [vmem:[#allocation7 + $0x40] sm:$0xff]
    %v198 = vld [vmem:[#allocation7 + $0x48] sm:$0xff]
    %v199 = vld [vmem:[#allocation7 + $0x50] sm:$0xff]
    %v200 = vld [vmem:[#allocation7 + $0x58] sm:$0xff]
    %v201 = vld [vmem:[#allocation7 + $0x60] sm:$0xff]
    %v202 = vld [vmem:[#allocation7 + $0x68] sm:$0xff]
    %v203 = vld [vmem:[#allocation7 + $0x70] sm:$0xff]
    %v204 = vld [vmem:[#allocation7 + $0x78] sm:$0xff]
    %v205 = vld [vmem:[#allocation7 + $0x80] sm:$0xff]
    %v206 = vld [vmem:[#allocation7 + $0x88] sm:$0xff]
    %v207 = vld [vmem:[#allocation7 + $0x90] sm:$0xff]
    %v208 = vld [vmem:[#allocation7 + $0x98] sm:$0xff]
    %v209 = vld [vmem:[#allocation7 + $0xa0] sm:$0xff]
    %v210 = vld [vmem:[#allocation7 + $0xa8] sm:$0xff]
    %v211 = vld [vmem:[#allocation7 + $0xb0] sm:$0xff]
    %v212 = vld [vmem:[#allocation7 + $0xb8] sm:$0xff]
    %v213 = vld [vmem:[#allocation7 + $0xc0] sm:$0xff]
    %v214 = vld [vmem:[#allocation7 + $0xc8] sm:$0xff]
    %v215 = vld [vmem:[#allocation7 + $0xd0] sm:$0xff]
    %v216 = vld [vmem:[#allocation7 + $0xd8] sm:$0xff]
    %v217 = vld [vmem:[#allocation7 + $0xe0] sm:$0xff]
    %v218 = vld [vmem:[#allocation7 + $0xe8] sm:$0xff]
    %v219 = vld [vmem:[#allocation7 + $0xf0] sm:$0xff]
    %v220 = vld [vmem:[#allocation7 + $0xf8] sm:$0xff]
    %221 = vmatprep.subr.mxu0 0.0
    %222 = vmatpush1.msra.mxu0 %v189
    %223 = vmatprep.subr.mxu0 0.0
    %224 = vmatpush1.msra.mxu0 %v190
    %225 = vmatprep.subr.mxu0 0.0
    %226 = vmatpush1.msra.mxu0 %v191
    %227 = vmatprep.subr.mxu0 0.0
    %228 = vmatpush1.msra.mxu0 %v192
    %229 = vmatprep.subr.mxu0 0.0
    %230 = vmatpush1.msra.mxu0 %v193
    %231 = vmatprep.subr.mxu0 0.0
    %232 = vmatpush1.msra.mxu0 %v194
    %233 = vmatprep.subr.mxu0 0.0
    %234 = vmatpush1.msra.mxu0 %v195
    %235 = vmatprep.subr.mxu0 0.0
    %236 = vmatpush1.msra.mxu0 %v196
    %237 = vmatprep.subr.mxu0 0.0
    %238 = vmatpush1.msra.mxu0 %v197
    %239 = vmatprep.subr.mxu0 0.0
    %240 = vmatpush1.msra.mxu0 %v198
    %241 = vmatprep.subr.mxu0 0.0
    %242 = vmatpush1.msra.mxu0 %v199
    %243 = vmatprep.subr.mxu0 0.0
    %244 = vmatpush1.msra.mxu0 %v200
    %245 = vmatprep.subr.mxu0 0.0
    %246 = vmatpush1.msra.mxu0 %v201
    %247 = vmatprep.subr.mxu0 0.0
    %248 = vmatpush1.msra.mxu0 %v202
    %249 = vmatprep.subr.mxu0 0.0
    %250 = vmatpush1.msra.mxu0 %v203
    %251 = vmatprep.subr.mxu0 0.0
    %252 = vmatpush1.msra.mxu0 %v204
    %253 = vmatprep.subr.mxu0 0.0
    %254 = vmatpush1.msra.mxu0 %v205
    %255 = vmatprep.subr.mxu0 0.0
    %256 = vmatpush1.msra.mxu0 %v206
    %257 = vmatprep.subr.mxu0 0.0
    %258 = vmatpush1.msra.mxu0 %v207
    %259 = vmatprep.subr.mxu0 0.0
    %260 = vmatpush1.msra.mxu0 %v208
    %261 = vmatprep.subr.mxu0 0.0
    %262 = vmatpush1.msra.mxu0 %v209
    %263 = vmatprep.subr.mxu0 0.0
    %264 = vmatpush1.msra.mxu0 %v210
    %265 = vmatprep.subr.mxu0 0.0
    %266 = vmatpush1.msra.mxu0 %v211
    %267 = vmatprep.subr.mxu0 0.0
    %268 = vmatpush1.msra.mxu0 %v212
    %269 = vmatprep.subr.mxu0 0.0
    %270 = vmatpush1.msra.mxu0 %v213
    %271 = vmatprep.subr.mxu0 0.0
    %272 = vmatpush1.msra.mxu0 %v214
    %273 = vmatprep.subr.mxu0 0.0
    %274 = vmatpush1.msra.mxu0 %v215
    %275 = vmatprep.subr.mxu0 0.0
    %276 = vmatpush1.msra.mxu0 %v216
    %277 = vmatprep.subr.mxu0 0.0
    %278 = vmatpush1.msra.mxu0 %v217
    %279 = vmatprep.subr.mxu0 0.0
    %280 = vmatpush1.msra.mxu0 %v218
    %281 = vmatprep.subr.mxu0 0.0
    %282 = vmatpush1.msra.mxu0 %v219
    %283 = vmatprep.subr.mxu0 0.0
    %284 = vmatpush1.msra.mxu0 %v220
    %285 = vmatprep.mubr.f32.mxu0 %v186
    %286 = vmatmul.mubr.f32.gmra.mrb[0].mxu0 %v185
    %v287 = vpop.f32.mrb[0].mxu0
    %v288 = vadd.f32 0.0, %v287
    %v289 = vpop.f32.mrb[0].mxu0
    %290 = vmatprep.mubr.f32.mxu0 %v188
    %291 = vmatmul.mubr.f32.gmra.mrb[0].mxu0 %v187
    %v292 = vpop.f32.mrb[0].mxu0
    %v293 = vadd.f32 0.0, %v292
    %v294 = vpop.f32.mrb[0].mxu0
    %295 = vdwg.mxu0
    %v296 = vld [vmem:[%s4] sm:$0x7]
    %v297 = vadd.f32 %v62, %v288
    %v298 = vadd.f32 %v63, %v293
    %v299 = vlaneseq
    %v300 = vshrl.u32 %v299, 7
    %v301 = vsub.s32 0, %v300
    %v302 = vrot.slane %v296, %v301
    %v303 = vadd.f32 %v297, %v302
    %v304 = vadd.f32 %v298, %v302
    %305 = vadd.xlane.f32.xlu0 %v303
    %v306 = vpop.xlane.xlu0 %305
    %307 = vadd.xlane.f32.xlu0 %v304
    %v308 = vpop.xlane.xlu0 %307
    %v309 = vrcp.pop 128.0
    %v310 = vmul.f32 %v306, %v309
    %v311 = vmul.f32 %v308, %v309
    %v312 = vsub.f32 %v303, %v310
    %v313 = vsub.f32 %v304, %v311
    %v314 = vmul.f32 %v312, %v312
    %v315 = vmul.f32 %v313, %v313
    %316 = vadd.xlane.f32.xlu0 %v314
    %v317 = vpop.xlane.xlu0 %316
    %318 = vadd.xlane.f32.xlu0 %v315
    %v319 = vpop.xlane.xlu0 %318
    %v320 = vmul.f32 %v317, %v309
    %v321 = vmul.f32 %v319, %v309
    %v322 = vadd.f32 %v320, 1e-05
    %v323 = vadd.f32 %v321, 1e-05
    %v324 = vrsqrt.pop %v322
    %v325 = vrsqrt.pop %v323
    %v326 = vmul.f32 %v312, %v324
    %v327 = vmul.f32 %v313, %v325
    %v328 = vlaneseq
    %v329 = vshrl.u32 %v328, 7
    %v330 = vsub.s32 1, %v329
    %v331 = vrot.slane %v296, %v330
    %v332 = vmul.f32 %v326, %v331
    %v333 = vmul.f32 %v327, %v331
    %v334 = vlaneseq
    %v335 = vshrl.u32 %v334, 7
    %v336 = vsub.s32 2, %v335
    %v337 = vrot.slane %v296, %v336
    %v338 = vadd.f32 %v332, %v337
    %v339 = vadd.f32 %v333, %v337
    %340 = vst [vmem:[#allocation8] sm:$0xff] %v338
    %341 = vst [vmem:[#allocation8 + $0x8] sm:$0xff] %v339
    // Predicated region
    $region34: #{positional_wise_ffn.1} parent=1 // pred_check
      _
    $region35: #{positional_wise_ffn.1} parent=1 // pred_check_branch
      %343 = sbr.rel (0) target = $region37
    $region36: #{positional_wise_ffn.1} parent=1 // pred_region
      %s345 = ssub.s32 256, 256
      %346 = vsyncadd [#allocation4], %s345
      %s347 = sshll.u32 [#allocation8], 4
      %s348 = int_to_ptr.vmem [resolvable:$true] %s347
      %353 = dma.vmem_to_hbm [thread:$0]  %s348, 256, %s5, [#allocation4], 128, 128, 8
    $region37: #{positional_wise_ffn.1} parent=1 // pred_fallthru
      _
    // Predicated region
    $region38: #{positional_wise_ffn.1} parent=1 // pred_check
      _
    $region39: #{positional_wise_ffn.1} parent=1 // pred_check_branch
      %355 = sbr.rel (0) target = $region41
    $region40: #{positional_wise_ffn.1} parent=1 // pred_region
      %356 = dma.done [#allocation4], 256
    $region41: #{positional_wise_ffn.1} parent=1 // pred_fallthru
      _
    %357 = vsyncpa [#allocation3], 1
    %358 = vsyncpa [#allocation6], 1
    %359 = vsyncpa [#allocation4], 1

</llo_original>
